<compile_context>
chip_gen: v7x
topology: tpu7x:2x2x1
jax: 0.10.0
libtpu: 0.0.40
codegen_flags: <defaults>
</compile_context>

<pallas_src>
import math
from functools import partial

import jax
import jax.numpy as jnp
from jax import lax
from jax.experimental import pallas as pl
from jax.experimental.pallas import tpu as pltpu


def _se_kernel(x_ref, w1_ref, b1_ref, w2_ref, b2_ref, o_ref, *, hw):
    """One batch-tile of the SE block.

    x_ref : (C, Bt*HW)  residual; channels on sublanes, batch*pixels on lanes
    w1_ref: (C16, C)    fc1 weight (PyTorch Linear layout: (out, in))
    b1_ref: (C16, 1)
    w2_ref: (C, C16)    fc2 weight
    b2_ref: (C, 1)
    o_ref : (C, Bt*HW)
    """
    x = x_ref[...].astype(jnp.float32)          # (C, L), L = Bt*HW
    _, l = x.shape
    bt = l // hw

    # ---- global average pool, batched over the tile ----------------------
    # pool[p, b] = 1/HW if pixel p belongs to image b, else 0  (no int div)
    pix = lax.broadcasted_iota(jnp.int32, (l, bt), 0)
    img = lax.broadcasted_iota(jnp.int32, (l, bt), 1)
    in_img = (pix >= img * hw) & (pix < (img + 1) * hw)
    pool = jnp.where(in_img, 1.0 / hw, 0.0)                      # (L, Bt)
    avg = jnp.dot(x, pool, preferred_element_type=jnp.float32)   # (C, Bt)

    # ---- fc1 -> relu -> fc2 -> sigmoid, batched over Bt -------------------
    h = jnp.dot(w1_ref[...], avg, preferred_element_type=jnp.float32)
    h = jnp.maximum(h + b1_ref[...], 0.0)                        # (C16, Bt)
    s = jnp.dot(w2_ref[...], h, preferred_element_type=jnp.float32)
    s = jax.nn.sigmoid(s + b2_ref[...])                          # (C, Bt)

    # ---- broadcast gate back to every pixel (hoisted, lane-dense) ---------
    # expand[b, p] = 1 if pixel p belongs to image b
    img2 = lax.broadcasted_iota(jnp.int32, (bt, l), 0)
    pix2 = lax.broadcasted_iota(jnp.int32, (bt, l), 1)
    expand = jnp.where((pix2 >= img2 * hw) & (pix2 < (img2 + 1) * hw), 1.0, 0.0)
    gate = jnp.dot(s, expand, preferred_element_type=jnp.float32)  # (C, L)

    # Single dense multiply + single unmasked lane-dense store.
    o_ref[...] = (x * gate).astype(o_ref.dtype)


def _pick_batch_tile(B, C, HW, itemsize, vmem_budget_bytes):
    """Largest batch tile (divisor of B) whose double-buffered in+out blocks fit
    the VMEM budget, preferring tiles whose lane width Bt*HW is a multiple of
    128 (unmasked vector stores)."""
    per_image = 4 * C * HW * itemsize          # 2x input + 2x output buffers
    divisors = [d for d in range(1, B + 1) if B % d == 0]
    fitting = [d for d in divisors if d * per_image <= vmem_budget_bytes] or [1]
    aligned = [d for d in fitting if (d * HW) % 128 == 0]
    return max(aligned) if aligned else max(fitting)


def attention_block(x, w1, b1, w2, b2, *, vmem_budget_bytes=16 << 20):
    """x: (B, C, H, W) f32; w1: (C16, C); b1: (C16,); w2: (C, C16); b2: (C,)."""
    B, C, H, W = x.shape
    C16 = w1.shape[0]
    HW = H * W
    itemsize = jnp.dtype(x.dtype).itemsize

    # Lane-dense layout: lane axis = batch*pixels (128-wide for the demo shape).
    # Wrapper-side transpose is layout plumbing only.
    x_cl = jnp.transpose(x.reshape(B, C, HW), (1, 0, 2)).reshape(C, B * HW)
    b1c = b1.reshape(C16, 1).astype(jnp.float32)
    b2c = b2.reshape(C, 1).astype(jnp.float32)

    # Batch tile: whole batch in one step for small problems; tiles sized for a
    # conservative VMEM budget (fits v7x's smaller 64 MiB VMEM) otherwise.
    Bt = _pick_batch_tile(B, C, HW, itemsize, vmem_budget_bytes)
    L = Bt * HW
    grid = (B // Bt,)

    cost = pl.CostEstimate(
        flops=int(2 * B * C * HW          # pooling matmul
                  + 2 * B * C16 * C       # fc1
                  + 2 * B * C * C16       # fc2
                  + 2 * B * C * HW        # gate broadcast matmul
                  + B * C * HW),          # gating multiply
        transcendentals=int(B * C),       # sigmoid
        bytes_accessed=int(2 * B * C * HW * itemsize
                           + (C16 * C + C * C16 + C16 + C) * 4),
    )

    out_cl = pl.pallas_call(
        partial(_se_kernel, hw=HW),
        out_shape=jax.ShapeDtypeStruct((C, B * HW), x.dtype),
        grid_spec=pltpu.PrefetchScalarGridSpec(
            num_scalar_prefetch=0,
            grid=grid,
            in_specs=[
                pl.BlockSpec((C, L), lambda i: (0, i)),
                pl.BlockSpec((C16, C), lambda i: (0, 0)),
                pl.BlockSpec((C16, 1), lambda i: (0, 0)),
                pl.BlockSpec((C, C16), lambda i: (0, 0)),
                pl.BlockSpec((C, 1), lambda i: (0, 0)),
            ],
            out_specs=pl.BlockSpec((C, L), lambda i: (0, i)),
        ),
        compiler_params=pltpu.CompilerParams(
            dimension_semantics=("parallel",)),
        cost_estimate=cost,
    )(x_cl, w1, b1c, w2, b2c)

    return out_cl.reshape(C, B, HW).transpose(1, 0, 2).reshape(B, C, H, W)


def attention_block_ref(x, w1, b1, w2, b2):
    """Plain-JAX reference matching the PyTorch module."""
    avg = jnp.mean(x, axis=(2, 3))                      # (B, C)
    h = jax.nn.relu(avg @ w1.T + b1)                    # (B, C16)
    s = jax.nn.sigmoid(h @ w2.T + b2)                   # (B, C)
    return x * s[:, :, None, None]


if __name__ == "__main__":
    # Small shapes consistent with the module: planes=32 -> round(32/16)=2, size=8.
    B, C, H, W = 2, 32, 8, 8
    C16 = round(C / 16)

    key = jax.random.PRNGKey(0)
    kx, k1, k2, k3, k4 = jax.random.split(key, 5)
    x = jax.random.normal(kx, (B, C, H, W), dtype=jnp.float32)
    # Deterministic parameter init (PyTorch Linear layout: weight = (out, in)).
    w1 = jax.random.normal(k1, (C16, C), dtype=jnp.float32) * 0.1
    b1 = jax.random.normal(k2, (C16,), dtype=jnp.float32) * 0.1
    w2 = jax.random.normal(k3, (C, C16), dtype=jnp.float32) * 0.1
    b2 = jax.random.normal(k4, (C,), dtype=jnp.float32) * 0.1

    out = jax.block_until_ready(attention_block(x, w1, b1, w2, b2))
    ref = jax.block_until_ready(attention_block_ref(x, w1, b1, w2, b2))

    assert out.shape == (B, C, H, W)
    assert jnp.allclose(out, ref, atol=1e-5, rtol=1e-5), "mismatch vs reference"
    print("KERNEL_OK")
</pallas_src>

<mosaic_0001>
module attributes {stable_mosaic.version = 11 : i64} {
  func.func @_se_kernel(%arg0: i32, %arg1: memref<32x128xf32, #tpu.memory_space<vmem>>, %arg2: memref<2x32xf32, #tpu.memory_space<vmem>>, %arg3: memref<2x1xf32, #tpu.memory_space<vmem>>, %arg4: memref<32x2xf32, #tpu.memory_space<vmem>>, %arg5: memref<32x1xf32, #tpu.memory_space<vmem>>, %arg6: memref<32x128xf32, #tpu.memory_space<vmem>>) attributes {dimension_semantics = [#tpu.dimension_semantics<parallel>], iteration_bounds = array<i64: 1>, scalar_prefetch = 0 : i64, scratch_operands = 0 : i64, tpu.core_type = #tpu.core_type<tc>, window_params = [{transform_indices = @transform_0, window_bounds = array<i64: 32, 128>}, {pipeline_mode = #tpu.pipeline_mode<synchronous>, transform_indices = @transform_1, window_bounds = array<i64: 2, 32>}, {pipeline_mode = #tpu.pipeline_mode<synchronous>, transform_indices = @transform_2, window_bounds = array<i64: 2, 1>}, {pipeline_mode = #tpu.pipeline_mode<synchronous>, transform_indices = @transform_3, window_bounds = array<i64: 32, 2>}, {pipeline_mode = #tpu.pipeline_mode<synchronous>, transform_indices = @transform_4, window_bounds = array<i64: 32, 1>}, {transform_indices = @transform_5, window_bounds = array<i64: 32, 128>}]} {
    %c0 = arith.constant 0 : index
    %c0_0 = arith.constant 0 : index
    %0 = vector.load %arg1[%c0, %c0_0] : memref<32x128xf32, #tpu.memory_space<vmem>>, vector<32x128xf32>
    %1 = tpu.iota {dimensions = array<i32: 0>} : vector<128x2xi32>
    %2 = tpu.iota {dimensions = array<i32: 1>} : vector<128x2xi32>
    %c64_i32 = arith.constant 64 : i32
    %3 = vector.broadcast %c64_i32 : i32 to vector<128x2xi32>
    %4 = arith.muli %2, %3 : vector<128x2xi32>
    %5 = arith.cmpi sge, %1, %4 : vector<128x2xi32>
    %c1_i32 = arith.constant 1 : i32
    %6 = vector.broadcast %c1_i32 : i32 to vector<128x2xi32>
    %7 = arith.addi %2, %6 : vector<128x2xi32>
    %c64_i32_1 = arith.constant 64 : i32
    %8 = vector.broadcast %c64_i32_1 : i32 to vector<128x2xi32>
    %9 = arith.muli %7, %8 : vector<128x2xi32>
    %10 = arith.cmpi slt, %1, %9 : vector<128x2xi32>
    %11 = arith.andi %5, %10 : vector<128x2xi1>
    %cst = arith.constant 1.562500e-02 : f32
    %cst_2 = arith.constant 0.000000e+00 : f32
    %12 = vector.broadcast %cst : f32 to vector<128x2xf32>
    %13 = vector.broadcast %cst_2 : f32 to vector<128x2xf32>
    %14 = arith.select %11, %12, %13 : vector<128x2xi1>, vector<128x2xf32>
    %cst_3 = arith.constant dense<0.000000e+00> : vector<32x2xf32>
    %15 = tpu.matmul %0, %14, %cst_3 {dimension_numbers = #tpu.dot_dimension_numbers<[1], [0], [0], [1], [0, 0, 1, 1], [], []>} : vector<32x128xf32>, vector<128x2xf32>, vector<32x2xf32> -> vector<32x2xf32>
    %c0_4 = arith.constant 0 : index
    %c0_5 = arith.constant 0 : index
    %16 = vector.load %arg2[%c0_4, %c0_5] : memref<2x32xf32, #tpu.memory_space<vmem>>, vector<2x32xf32>
    %cst_6 = arith.constant dense<0.000000e+00> : vector<2x2xf32>
    %17 = tpu.matmul %16, %15, %cst_6 {dimension_numbers = #tpu.dot_dimension_numbers<[1], [0], [0], [1], [0, 0, 1, 1], [], []>} : vector<2x32xf32>, vector<32x2xf32>, vector<2x2xf32> -> vector<2x2xf32>
    %c0_7 = arith.constant 0 : index
    %c0_8 = arith.constant 0 : index
    %18 = vector.load %arg3[%c0_7, %c0_8] : memref<2x1xf32, #tpu.memory_space<vmem>>, vector<2x1xf32>
    %19 = vector.broadcast %18 : vector<2x1xf32> to vector<2x2xf32>
    %20 = arith.addf %17, %19 : vector<2x2xf32>
    %cst_9 = arith.constant 0.000000e+00 : f32
    %21 = vector.broadcast %cst_9 : f32 to vector<2x2xf32>
    %22 = arith.maximumf %20, %21 : vector<2x2xf32>
    %c0_10 = arith.constant 0 : index
    %c0_11 = arith.constant 0 : index
    %23 = vector.load %arg4[%c0_10, %c0_11] : memref<32x2xf32, #tpu.memory_space<vmem>>, vector<32x2xf32>
    %cst_12 = arith.constant dense<0.000000e+00> : vector<32x2xf32>
    %24 = tpu.matmul %23, %22, %cst_12 {dimension_numbers = #tpu.dot_dimension_numbers<[1], [0], [0], [1], [0, 0, 1, 1], [], []>} : vector<32x2xf32>, vector<2x2xf32>, vector<32x2xf32> -> vector<32x2xf32>
    %c0_13 = arith.constant 0 : index
    %c0_14 = arith.constant 0 : index
    %25 = vector.load %arg5[%c0_13, %c0_14] : memref<32x1xf32, #tpu.memory_space<vmem>>, vector<32x1xf32>
    %26 = vector.broadcast %25 : vector<32x1xf32> to vector<32x2xf32>
    %27 = arith.addf %24, %26 : vector<32x2xf32>
    %28 = arith.negf %27 : vector<32x2xf32>
    %29 = math.exp %28 : vector<32x2xf32>
    %cst_15 = arith.constant 1.000000e+00 : f32
    %30 = vector.broadcast %cst_15 : f32 to vector<32x2xf32>
    %31 = arith.addf %30, %29 : vector<32x2xf32>
    %32 = arith.divf %30, %31 : vector<32x2xf32>
    %33 = tpu.iota {dimensions = array<i32: 0>} : vector<2x128xi32>
    %34 = tpu.iota {dimensions = array<i32: 1>} : vector<2x128xi32>
    %c64_i32_16 = arith.constant 64 : i32
    %35 = vector.broadcast %c64_i32_16 : i32 to vector<2x128xi32>
    %36 = arith.muli %33, %35 : vector<2x128xi32>
    %37 = arith.cmpi sge, %34, %36 : vector<2x128xi32>
    %c1_i32_17 = arith.constant 1 : i32
    %38 = vector.broadcast %c1_i32_17 : i32 to vector<2x128xi32>
    %39 = arith.addi %33, %38 : vector<2x128xi32>
    %c64_i32_18 = arith.constant 64 : i32
    %40 = vector.broadcast %c64_i32_18 : i32 to vector<2x128xi32>
    %41 = arith.muli %39, %40 : vector<2x128xi32>
    %42 = arith.cmpi slt, %34, %41 : vector<2x128xi32>
    %43 = arith.andi %37, %42 : vector<2x128xi1>
    %cst_19 = arith.constant 1.000000e+00 : f32
    %cst_20 = arith.constant 0.000000e+00 : f32
    %44 = vector.broadcast %cst_19 : f32 to vector<2x128xf32>
    %45 = vector.broadcast %cst_20 : f32 to vector<2x128xf32>
    %46 = arith.select %43, %44, %45 : vector<2x128xi1>, vector<2x128xf32>
    %cst_21 = arith.constant dense<0.000000e+00> : vector<32x128xf32>
    %47 = tpu.matmul %32, %46, %cst_21 {dimension_numbers = #tpu.dot_dimension_numbers<[1], [0], [0], [1], [0, 0, 1, 1], [], []>} : vector<32x2xf32>, vector<2x128xf32>, vector<32x128xf32> -> vector<32x128xf32>
    %48 = arith.mulf %0, %47 : vector<32x128xf32>
    %c0_22 = arith.constant 0 : index
    %c0_23 = arith.constant 0 : index
    %49 = vector.load %arg6[%c0_22, %c0_23] : memref<32x128xf32, #tpu.memory_space<vmem>>, vector<32x128xf32>
    tpu.vector_store %arg6[%c0_22, %c0_23], %48 {strides = array<i32>} : memref<32x128xf32, #tpu.memory_space<vmem>>, vector<32x128xf32>,
    return
  }
  func.func @transform_0(%arg0: i32) -> (i32, i32) {
    %c0_i32 = arith.constant 0 : i32
    %c0_i32_0 = arith.constant 0 : i32
    return %c0_i32, %arg0 : i32, i32
  }
  func.func @transform_1(%arg0: i32) -> (i32, i32) {
    %c0_i32 = arith.constant 0 : i32
    %c0_i32_0 = arith.constant 0 : i32
    %c0_i32_1 = arith.constant 0 : i32
    return %c0_i32, %c0_i32_0 : i32, i32
  }
  func.func @transform_2(%arg0: i32) -> (i32, i32) {
    %c0_i32 = arith.constant 0 : i32
    %c0_i32_0 = arith.constant 0 : i32
    %c0_i32_1 = arith.constant 0 : i32
    return %c0_i32, %c0_i32_0 : i32, i32
  }
  func.func @transform_3(%arg0: i32) -> (i32, i32) {
    %c0_i32 = arith.constant 0 : i32
    %c0_i32_0 = arith.constant 0 : i32
    %c0_i32_1 = arith.constant 0 : i32
    return %c0_i32, %c0_i32_0 : i32, i32
  }
  func.func @transform_4(%arg0: i32) -> (i32, i32) {
    %c0_i32 = arith.constant 0 : i32
    %c0_i32_0 = arith.constant 0 : i32
    %c0_i32_1 = arith.constant 0 : i32
    return %c0_i32, %c0_i32_0 : i32, i32
  }
  func.func @transform_5(%arg0: i32) -> (i32, i32) {
    %c0_i32 = arith.constant 0 : i32
    %c0_i32_0 = arith.constant 0 : i32
    return %c0_i32, %arg0 : i32, i32
  }
}

</mosaic_0001>

<llo_original>
// kernel: tpu_custom_call.1
$region0: #{tpu_custom_call.1}
  #allocation0 [shape = 'u32[]', space=smem, size = 0x4, offset = 0x4, fixed_abs, tag = 'smem constant byte address 0x4 - core index']
  #allocation1 [shape = 'u32[144,128]{1,0:T(1,128)}', space=vmem, size = 0x12000, scoped, tag = 'internal scratch']
  %s0 = inlined_call_operand.vmem [shape: f32[32,128], index: 0, kind: input, shape index: {}]
  %s1 = inlined_call_operand.vmem [shape: f32[2,32], index: 1, kind: input, shape index: {}]
  %s2 = inlined_call_operand.vmem [shape: f32[2,1], index: 2, kind: input, shape index: {}]
  %s3 = inlined_call_operand.vmem [shape: f32[32,2], index: 3, kind: input, shape index: {}]
  %s4 = inlined_call_operand.vmem [shape: f32[32,1], index: 4, kind: input, shape index: {}]
  %s5 = inlined_call_operand.hbm [shape: f32[32,128], index: 5, kind: output, shape index: {}]
  %s6 = sld [smem:[#allocation0]]
  $region30: #{tpu_custom_call.1} parent=0
    _
  %s8 = ssub.s32 1, %s6
  %s9 = scalar_select 0, %s8, %s6
  $region1: #{tpu_custom_call.1} parent=0
    #allocation2 [shape = 'u8[16384]{0}', space=vmem, size = 0x4000, scoped, tag = 'output window, operand 0, single buffered']
    #allocation3 [shape = 's32[1]{0}', space=sflag, size = 0x4, scoped, tag = 'scoped memory for tpu_custom_call.1']
    %10 = vsyncpa [#allocation3], 0
    // Predicated region
    $region2: #{tpu_custom_call.1} parent=1 // pred_check
      _
    $region3: #{tpu_custom_call.1} parent=1 // pred_check_branch
      %12 = sbr.rel (0) target = $region5
    $region4: #{tpu_custom_call.1} parent=1 // pred_region
      _
    $region5: #{tpu_custom_call.1} parent=1 // pred_fallthru
      _
    // Predicated region
    $region6: #{tpu_custom_call.1} parent=1 // pred_check
      _
    $region7: #{tpu_custom_call.1} parent=1 // pred_check_branch
      %14 = sbr.rel (0) target = $region9
    $region8: #{tpu_custom_call.1} parent=1 // pred_region
      _
    $region9: #{tpu_custom_call.1} parent=1 // pred_fallthru
      _
    // Predicated region
    $region10: #{tpu_custom_call.1} parent=1 // pred_check
      _
    $region11: #{tpu_custom_call.1} parent=1 // pred_check_branch
      %16 = sbr.rel (0) target = $region13
    $region12: #{tpu_custom_call.1} parent=1 // pred_region
      _
    $region13: #{tpu_custom_call.1} parent=1 // pred_fallthru
      _
    // Predicated region
    $region14: #{tpu_custom_call.1} parent=1 // pred_check
      _
    $region15: #{tpu_custom_call.1} parent=1 // pred_check_branch
      %18 = sbr.rel (0) target = $region17
    $region16: #{tpu_custom_call.1} parent=1 // pred_region
      _
    $region17: #{tpu_custom_call.1} parent=1 // pred_fallthru
      _
    // Predicated region
    $region18: #{tpu_custom_call.1} parent=1 // pred_check
      _
    $region19: #{tpu_custom_call.1} parent=1 // pred_check_branch
      %20 = sbr.rel (0) target = $region21
    $region20: #{tpu_custom_call.1} parent=1 // pred_region
      _
    $region21: #{tpu_custom_call.1} parent=1 // pred_fallthru
      _
    %v21 = vld [vmem:[%s0] sm:$0xff]
    %v22 = vld [vmem:[%s0 + $0x8] sm:$0xff]
    %v23 = vld [vmem:[%s0 + $0x10] sm:$0xff]
    %v24 = vld [vmem:[%s0 + $0x18] sm:$0xff]
    %v25 = vlaneseq
    %v26 = vshrl.u32 %v25, 7
    %v27 = vadd.s32 %v26, 8
    %v28 = vadd.s32 %v26, 16
    %v29 = vadd.s32 %v26, 24
    %v30 = vadd.s32 %v26, 32
    %v31 = vadd.s32 %v26, 40
    %v32 = vadd.s32 %v26, 48
    %v33 = vadd.s32 %v26, 56
    %v34 = vadd.s32 %v26, 64
    %v35 = vadd.s32 %v26, 72
    %v36 = vadd.s32 %v26, 80
    %v37 = vadd.s32 %v26, 88
    %v38 = vadd.s32 %v26, 96
    %v39 = vadd.s32 %v26, 104
    %v40 = vadd.s32 %v26, 112
    %v41 = vadd.s32 %v26, 120
    %v42 = vlaneseq
    %v43 = vand.u32 %v42, 127
    %v44 = vmul.u32 %v43, 64
    %vm45 = vcmp.ge.s32.totalorder %v26, %v44
    %vm46 = vcmp.ge.s32.totalorder %v27, %v44
    %vm47 = vcmp.ge.s32.totalorder %v28, %v44
    %vm48 = vcmp.ge.s32.totalorder %v29, %v44
    %vm49 = vcmp.ge.s32.totalorder %v30, %v44
    %vm50 = vcmp.ge.s32.totalorder %v31, %v44
    %vm51 = vcmp.ge.s32.totalorder %v32, %v44
    %vm52 = vcmp.ge.s32.totalorder %v33, %v44
    %vm53 = vcmp.ge.s32.totalorder %v34, %v44
    %vm54 = vcmp.ge.s32.totalorder %v35, %v44
    %vm55 = vcmp.ge.s32.totalorder %v36, %v44
    %vm56 = vcmp.ge.s32.totalorder %v37, %v44
    %vm57 = vcmp.ge.s32.totalorder %v38, %v44
    %vm58 = vcmp.ge.s32.totalorder %v39, %v44
    %vm59 = vcmp.ge.s32.totalorder %v40, %v44
    %vm60 = vcmp.ge.s32.totalorder %v41, %v44
    %v61 = vadd.s32 %v43, 1
    %v62 = vmul.u32 %v61, 64
    %vm63 = vcmp.lt.s32.totalorder %v26, %v62
    %vm64 = vcmp.lt.s32.totalorder %v27, %v62
    %vm65 = vcmp.lt.s32.totalorder %v28, %v62
    %vm66 = vcmp.lt.s32.totalorder %v29, %v62
    %vm67 = vcmp.lt.s32.totalorder %v30, %v62
    %vm68 = vcmp.lt.s32.totalorder %v31, %v62
    %vm69 = vcmp.lt.s32.totalorder %v32, %v62
    %vm70 = vcmp.lt.s32.totalorder %v33, %v62
    %vm71 = vcmp.lt.s32.totalorder %v34, %v62
    %vm72 = vcmp.lt.s32.totalorder %v35, %v62
    %vm73 = vcmp.lt.s32.totalorder %v36, %v62
    %vm74 = vcmp.lt.s32.totalorder %v37, %v62
    %vm75 = vcmp.lt.s32.totalorder %v38, %v62
    %vm76 = vcmp.lt.s32.totalorder %v39, %v62
    %vm77 = vcmp.lt.s32.totalorder %v40, %v62
    %vm78 = vcmp.lt.s32.totalorder %v41, %v62
    %vm79 = vmand %vm45, %vm63
    %vm80 = vmand %vm46, %vm64
    %vm81 = vmand %vm47, %vm65
    %vm82 = vmand %vm48, %vm66
    %vm83 = vmand %vm49, %vm67
    %vm84 = vmand %vm50, %vm68
    %vm85 = vmand %vm51, %vm69
    %vm86 = vmand %vm52, %vm70
    %vm87 = vmand %vm53, %vm71
    %vm88 = vmand %vm54, %vm72
    %vm89 = vmand %vm55, %vm73
    %vm90 = vmand %vm56, %vm74
    %vm91 = vmand %vm57, %vm75
    %vm92 = vmand %vm58, %vm76
    %vm93 = vmand %vm59, %vm77
    %vm94 = vmand %vm60, %vm78
    %v95 = vsel %vm79, 0.015625, 0.0
    %v96 = vsel %vm80, 0.015625, 0.0
    %v97 = vsel %vm81, 0.015625, 0.0
    %v98 = vsel %vm82, 0.015625, 0.0
    %v99 = vsel %vm83, 0.015625, 0.0
    %v100 = vsel %vm84, 0.015625, 0.0
    %v101 = vsel %vm85, 0.015625, 0.0
    %v102 = vsel %vm86, 0.015625, 0.0
    %v103 = vsel %vm87, 0.015625, 0.0
    %v104 = vsel %vm88, 0.015625, 0.0
    %v105 = vsel %vm89, 0.015625, 0.0
    %v106 = vsel %vm90, 0.015625, 0.0
    %v107 = vsel %vm91, 0.015625, 0.0
    %v108 = vsel %vm92, 0.015625, 0.0
    %v109 = vsel %vm93, 0.015625, 0.0
    %v110 = vsel %vm94, 0.015625, 0.0
    %111 = vmatprep.subr.mxu0 0.0
    %112 = vmatpush1.msra.mxu0 %v95
    %113 = vmatprep.subr.mxu0 0.0
    %114 = vmatpush1.msra.mxu0 %v96
    %115 = vmatprep.subr.mxu0 0.0
    %116 = vmatpush1.msra.mxu0 %v97
    %117 = vmatprep.subr.mxu0 0.0
    %118 = vmatpush1.msra.mxu0 %v98
    %119 = vmatprep.subr.mxu0 0.0
    %120 = vmatpush1.msra.mxu0 %v99
    %121 = vmatprep.subr.mxu0 0.0
    %122 = vmatpush1.msra.mxu0 %v100
    %123 = vmatprep.subr.mxu0 0.0
    %124 = vmatpush1.msra.mxu0 %v101
    %125 = vmatprep.subr.mxu0 0.0
    %126 = vmatpush1.msra.mxu0 %v102
    %127 = vmatprep.subr.mxu0 0.0
    %128 = vmatpush1.msra.mxu0 %v103
    %129 = vmatprep.subr.mxu0 0.0
    %130 = vmatpush1.msra.mxu0 %v104
    %131 = vmatprep.subr.mxu0 0.0
    %132 = vmatpush1.msra.mxu0 %v105
    %133 = vmatprep.subr.mxu0 0.0
    %134 = vmatpush1.msra.mxu0 %v106
    %135 = vmatprep.subr.mxu0 0.0
    %136 = vmatpush1.msra.mxu0 %v107
    %137 = vmatprep.subr.mxu0 0.0
    %138 = vmatpush1.msra.mxu0 %v108
    %139 = vmatprep.subr.mxu0 0.0
    %140 = vmatpush1.msra.mxu0 %v109
    %141 = vmatprep.subr.mxu0 0.0
    %142 = vmatpush1.msra.mxu0 %v110
    %143 = vmatprep.subr.mxu0 0.0
    %144 = vmatpush1.msra.mxu0 0.0
    %145 = vmatprep.subr.mxu0 0.0
    %146 = vmatpush1.msra.mxu0 0.0
    %147 = vmatprep.subr.mxu0 0.0
    %148 = vmatpush1.msra.mxu0 0.0
    %149 = vmatprep.subr.mxu0 0.0
    %150 = vmatpush1.msra.mxu0 0.0
    %151 = vmatprep.subr.mxu0 0.0
    %152 = vmatpush1.msra.mxu0 0.0
    %153 = vmatprep.subr.mxu0 0.0
    %154 = vmatpush1.msra.mxu0 0.0
    %155 = vmatprep.subr.mxu0 0.0
    %156 = vmatpush1.msra.mxu0 0.0
    %157 = vmatprep.subr.mxu0 0.0
    %158 = vmatpush1.msra.mxu0 0.0
    %159 = vmatprep.subr.mxu0 0.0
    %160 = vmatpush1.msra.mxu0 0.0
    %161 = vmatprep.subr.mxu0 0.0
    %162 = vmatpush1.msra.mxu0 0.0
    %163 = vmatprep.subr.mxu0 0.0
    %164 = vmatpush1.msra.mxu0 0.0
    %165 = vmatprep.subr.mxu0 0.0
    %166 = vmatpush1.msra.mxu0 0.0
    %167 = vmatprep.subr.mxu0 0.0
    %168 = vmatpush1.msra.mxu0 0.0
    %169 = vmatprep.subr.mxu0 0.0
    %170 = vmatpush1.msra.mxu0 0.0
    %171 = vmatprep.subr.mxu0 0.0
    %172 = vmatpush1.msra.mxu0 0.0
    %173 = vmatprep.subr.mxu0 0.0
    %174 = vmatpush1.msra.mxu0 0.0
    %175 = vmatprep.mubr.f32.mxu0 0.0
    %176 = vmatmul.mubr.f32.gmra.mrb[0].mxu0 %v21
    %v177 = vpop.f32.mrb[0].mxu0
    %v178 = vadd.f32 0.0, %v177
    %v179 = vpop.f32.mrb[0].mxu0
    %180 = vmatprep.mubr.f32.mxu0 0.0
    %181 = vmatmul.mubr.f32.gmra.mrb[0].mxu0 %v22
    %v182 = vpop.f32.mrb[0].mxu0
    %v183 = vadd.f32 0.0, %v182
    %v184 = vpop.f32.mrb[0].mxu0
    %185 = vmatprep.mubr.f32.mxu0 0.0
    %186 = vmatmul.mubr.f32.gmra.mrb[0].mxu0 %v23
    %v187 = vpop.f32.mrb[0].mxu0
    %v188 = vadd.f32 0.0, %v187
    %v189 = vpop.f32.mrb[0].mxu0
    %190 = vmatprep.mubr.f32.mxu0 0.0
    %191 = vmatmul.mubr.f32.gmra.mrb[0].mxu0 %v24
    %v192 = vpop.f32.mrb[0].mxu0
    %v193 = vadd.f32 0.0, %v192
    %v194 = vpop.f32.mrb[0].mxu0
    %195 = vdwg.mxu0
    %v196 = vld [vmem:[%s1] sm:$0x3]
    %v197 = vld [vmem:[%s2] sm:$0x3]
    %199 = vset.pattern.permute.xlu0 0
    %200 = vperm.xlu0 %199, %v197
    %v201 = vpop.permute.xlu0 %200
    %vm203 = vcmask 261120
    %v205 = vsel %vm203, %v196, 0
    %207 = vmatprep.subr.mxu0 0.0
    %208 = vmatpush1.msra.mxu0 %v178
    %209 = vmatprep.subr.mxu0 0.0
    %210 = vmatpush1.msra.mxu0 %v183
    %211 = vmatprep.subr.mxu0 0.0
    %212 = vmatpush1.msra.mxu0 %v188
    %213 = vmatprep.subr.mxu0 0.0
    %214 = vmatpush1.msra.mxu0 %v193
    %215 = vmatprep.subr.mxu0 0.0
    %216 = vmatpush1.msra.mxu0 0.0
    %217 = vmatprep.subr.mxu0 0.0
    %218 = vmatpush1.msra.mxu0 0.0
    %219 = vmatprep.subr.mxu0 0.0
    %220 = vmatpush1.msra.mxu0 0.0
    %221 = vmatprep.subr.mxu0 0.0
    %222 = vmatpush1.msra.mxu0 0.0
    %223 = vmatprep.subr.mxu0 0.0
    %224 = vmatpush1.msra.mxu0 0.0
    %225 = vmatprep.subr.mxu0 0.0
    %226 = vmatpush1.msra.mxu0 0.0
    %227 = vmatprep.subr.mxu0 0.0
    %228 = vmatpush1.msra.mxu0 0.0
    %229 = vmatprep.subr.mxu0 0.0
    %230 = vmatpush1.msra.mxu0 0.0
    %231 = vmatprep.subr.mxu0 0.0
    %232 = vmatpush1.msra.mxu0 0.0
    %233 = vmatprep.subr.mxu0 0.0
    %234 = vmatpush1.msra.mxu0 0.0
    %235 = vmatprep.subr.mxu0 0.0
    %236 = vmatpush1.msra.mxu0 0.0
    %237 = vmatprep.subr.mxu0 0.0
    %238 = vmatpush1.msra.mxu0 0.0
    %239 = vmatprep.subr.mxu0 0.0
    %240 = vmatpush1.msra.mxu0 0.0
    %241 = vmatprep.subr.mxu0 0.0
    %242 = vmatpush1.msra.mxu0 0.0
    %243 = vmatprep.subr.mxu0 0.0
    %244 = vmatpush1.msra.mxu0 0.0
    %245 = vmatprep.subr.mxu0 0.0
    %246 = vmatpush1.msra.mxu0 0.0
    %247 = vmatprep.subr.mxu0 0.0
    %248 = vmatpush1.msra.mxu0 0.0
    %249 = vmatprep.subr.mxu0 0.0
    %250 = vmatpush1.msra.mxu0 0.0
    %251 = vmatprep.subr.mxu0 0.0
    %252 = vmatpush1.msra.mxu0 0.0
    %253 = vmatprep.subr.mxu0 0.0
    %254 = vmatpush1.msra.mxu0 0.0
    %255 = vmatprep.subr.mxu0 0.0
    %256 = vmatpush1.msra.mxu0 0.0
    %257 = vmatprep.subr.mxu0 0.0
    %258 = vmatpush1.msra.mxu0 0.0
    %259 = vmatprep.subr.mxu0 0.0
    %260 = vmatpush1.msra.mxu0 0.0
    %261 = vmatprep.subr.mxu0 0.0
    %262 = vmatpush1.msra.mxu0 0.0
    %263 = vmatprep.subr.mxu0 0.0
    %264 = vmatpush1.msra.mxu0 0.0
    %265 = vmatprep.subr.mxu0 0.0
    %266 = vmatpush1.msra.mxu0 0.0
    %267 = vmatprep.subr.mxu0 0.0
    %268 = vmatpush1.msra.mxu0 0.0
    %269 = vmatprep.subr.mxu0 0.0
    %270 = vmatpush1.msra.mxu0 0.0
    %271 = vmatprep.mubr.f32.mxu0 0.0
    %272 = vmatmul.mubr.f32.gmra.mrb[0].mxu0 %v205
    %v273 = vpop.f32.mrb[0].mxu0
    %v274 = vadd.f32 %v201, %v273
    %v275 = vpop.f32.mrb[0].mxu0
    %276 = vdwg.mxu0
    %v277 = vmax.f32 %v274, 0.0
    %v278 = vld [vmem:[%s3] sm:$0xff]
    %v279 = vld [vmem:[%s3 + $0x8] sm:$0xff]
    %v280 = vld [vmem:[%s3 + $0x10] sm:$0xff]
    %v281 = vld [vmem:[%s3 + $0x18] sm:$0xff]
    %v282 = vld [vmem:[%s4] sm:$0xff]
    %v283 = vld [vmem:[%s4 + $0x8] sm:$0xff]
    %v284 = vld [vmem:[%s4 + $0x10] sm:$0xff]
    %v285 = vld [vmem:[%s4 + $0x18] sm:$0xff]
    %287 = vset.pattern.permute.xlu0 0
    %288 = vperm.xlu0 %287, %v282
    %v289 = vpop.permute.xlu0 %288
    %292 = vset.pattern.permute.xlu0 0
    %293 = vperm.xlu0 %292, %v283
    %v294 = vpop.permute.xlu0 %293
    %297 = vset.pattern.permute.xlu0 0
    %298 = vperm.xlu0 %297, %v284
    %v299 = vpop.permute.xlu0 %298
    %302 = vset.pattern.permute.xlu0 0
    %303 = vperm.xlu0 %302, %v285
    %v304 = vpop.permute.xlu0 %303
    %vm306 = vcmask 15360
    %v308 = vsel %vm306, %v278, 0
    %v311 = vsel %vm306, %v279, 0
    %v314 = vsel %vm306, %v280, 0
    %v317 = vsel %vm306, %v281, 0
    %vm319 = vcmask 1041408
    %v321 = vsel %vm319, %v277, 0
    %323 = vmatprep.subr.mxu0 0.0
    %324 = vmatpush1.msra.mxu0 %v321
    %325 = vmatprep.subr.mxu0 0.0
    %326 = vmatpush1.msra.mxu0 0.0
    %327 = vmatprep.subr.mxu0 0.0
    %328 = vmatpush1.msra.mxu0 0.0
    %329 = vmatprep.subr.mxu0 0.0
    %330 = vmatpush1.msra.mxu0 0.0
    %331 = vmatprep.subr.mxu0 0.0
    %332 = vmatpush1.msra.mxu0 0.0
    %333 = vmatprep.subr.mxu0 0.0
    %334 = vmatpush1.msra.mxu0 0.0
    %335 = vmatprep.subr.mxu0 0.0
    %336 = vmatpush1.msra.mxu0 0.0
    %337 = vmatprep.subr.mxu0 0.0
    %338 = vmatpush1.msra.mxu0 0.0
    %339 = vmatprep.subr.mxu0 0.0
    %340 = vmatpush1.msra.mxu0 0.0
    %341 = vmatprep.subr.mxu0 0.0
    %342 = vmatpush1.msra.mxu0 0.0
    %343 = vmatprep.subr.mxu0 0.0
    %344 = vmatpush1.msra.mxu0 0.0
    %345 = vmatprep.subr.mxu0 0.0
    %346 = vmatpush1.msra.mxu0 0.0
    %347 = vmatprep.subr.mxu0 0.0
    %348 = vmatpush1.msra.mxu0 0.0
    %349 = vmatprep.subr.mxu0 0.0
    %350 = vmatpush1.msra.mxu0 0.0
    %351 = vmatprep.subr.mxu0 0.0
    %352 = vmatpush1.msra.mxu0 0.0
    %353 = vmatprep.subr.mxu0 0.0
    %354 = vmatpush1.msra.mxu0 0.0
    %355 = vmatprep.subr.mxu0 0.0
    %356 = vmatpush1.msra.mxu0 0.0
    %357 = vmatprep.subr.mxu0 0.0
    %358 = vmatpush1.msra.mxu0 0.0
    %359 = vmatprep.subr.mxu0 0.0
    %360 = vmatpush1.msra.mxu0 0.0
    %361 = vmatprep.subr.mxu0 0.0
    %362 = vmatpush1.msra.mxu0 0.0
    %363 = vmatprep.subr.mxu0 0.0
    %364 = vmatpush1.msra.mxu0 0.0
    %365 = vmatprep.subr.mxu0 0.0
    %366 = vmatpush1.msra.mxu0 0.0
    %367 = vmatprep.subr.mxu0 0.0
    %368 = vmatpush1.msra.mxu0 0.0
    %369 = vmatprep.subr.mxu0 0.0
    %370 = vmatpush1.msra.mxu0 0.0
    %371 = vmatprep.subr.mxu0 0.0
    %372 = vmatpush1.msra.mxu0 0.0
    %373 = vmatprep.subr.mxu0 0.0
    %374 = vmatpush1.msra.mxu0 0.0
    %375 = vmatprep.subr.mxu0 0.0
    %376 = vmatpush1.msra.mxu0 0.0
    %377 = vmatprep.subr.mxu0 0.0
    %378 = vmatpush1.msra.mxu0 0.0
    %379 = vmatprep.subr.mxu0 0.0
    %380 = vmatpush1.msra.mxu0 0.0
    %381 = vmatprep.subr.mxu0 0.0
    %382 = vmatpush1.msra.mxu0 0.0
    %383 = vmatprep.subr.mxu0 0.0
    %384 = vmatpush1.msra.mxu0 0.0
    %385 = vmatprep.subr.mxu0 0.0
    %386 = vmatpush1.msra.mxu0 0.0
    %387 = vmatprep.mubr.f32.mxu0 0.0
    %388 = vmatmul.mubr.f32.gmra.mrb[0].mxu0 %v308
    %v389 = vpop.f32.mrb[0].mxu0
    %v390 = vadd.f32 %v289, %v389
    %v391 = vpop.f32.mrb[0].mxu0
    %392 = vmatprep.mubr.f32.mxu0 0.0
    %393 = vmatmul.mubr.f32.gmra.mrb[0].mxu0 %v311
    %v394 = vpop.f32.mrb[0].mxu0
    %v395 = vadd.f32 %v294, %v394
    %v396 = vpop.f32.mrb[0].mxu0
    %397 = vmatprep.mubr.f32.mxu0 0.0
    %398 = vmatmul.mubr.f32.gmra.mrb[0].mxu0 %v314
    %v399 = vpop.f32.mrb[0].mxu0
    %v400 = vadd.f32 %v299, %v399
    %v401 = vpop.f32.mrb[0].mxu0
    %402 = vmatprep.mubr.f32.mxu0 0.0
    %403 = vmatmul.mubr.f32.gmra.mrb[0].mxu0 %v317
    %v404 = vpop.f32.mrb[0].mxu0
    %v405 = vadd.f32 %v304, %v404
    %v406 = vpop.f32.mrb[0].mxu0
    %407 = vdwg.mxu0
    %v408 = vxor.u32 %v390, 2147483648
    %v409 = vxor.u32 %v395, 2147483648
    %v410 = vxor.u32 %v400, 2147483648
    %v411 = vxor.u32 %v405, 2147483648
    %v412 = vmul.f32 %v408, 1.442695
    %v413 = vpow.pop %v412
    %v414 = vmul.f32 %v409, 1.442695
    %v415 = vpow.pop %v414
    %v416 = vmul.f32 %v410, 1.442695
    %v417 = vpow.pop %v416
    %v418 = vmul.f32 %v411, 1.442695
    %v419 = vpow.pop %v418
    %v420 = vadd.f32 %v413, 1.0
    %v421 = vadd.f32 %v415, 1.0
    %v422 = vadd.f32 %v417, 1.0
    %v423 = vadd.f32 %v419, 1.0
    %v424 = vrcp.pop %v420
    %v425 = vmul.f32 1.0, %v424
    %v426 = vrcp.pop %v421
    %v427 = vmul.f32 1.0, %v426
    %v428 = vrcp.pop %v422
    %v429 = vmul.f32 1.0, %v428
    %v430 = vrcp.pop %v423
    %v431 = vmul.f32 1.0, %v430
    %v432 = vmul.u32 %v26, 64
    %vm433 = vcmp.ge.s32.totalorder %v43, %v432
    %v434 = vadd.s32 %v26, 1
    %v435 = vmul.u32 %v434, 64
    %vm436 = vcmp.lt.s32.totalorder %v43, %v435
    %vm437 = vmand %vm433, %vm436
    %v438 = vsel %vm437, 1.0, 0.0
    %v440 = vsel %vm306, %v425, 0
    %v443 = vsel %vm306, %v427, 0
    %v446 = vsel %vm306, %v429, 0
    %v449 = vsel %vm306, %v431, 0
    %v452 = vsel %vm319, %v438, 0
    %454 = vmatprep.subr.mxu0 0.0
    %455 = vmatpush1.msra.mxu0 %v452
    %456 = vmatprep.subr.mxu0 0.0
    %457 = vmatpush1.msra.mxu0 0.0
    %458 = vmatprep.subr.mxu0 0.0
    %459 = vmatpush1.msra.mxu0 0.0
    %460 = vmatprep.subr.mxu0 0.0
    %461 = vmatpush1.msra.mxu0 0.0
    %462 = vmatprep.subr.mxu0 0.0
    %463 = vmatpush1.msra.mxu0 0.0
    %464 = vmatprep.subr.mxu0 0.0
    %465 = vmatpush1.msra.mxu0 0.0
    %466 = vmatprep.subr.mxu0 0.0
    %467 = vmatpush1.msra.mxu0 0.0
    %468 = vmatprep.subr.mxu0 0.0
    %469 = vmatpush1.msra.mxu0 0.0
    %470 = vmatprep.subr.mxu0 0.0
    %471 = vmatpush1.msra.mxu0 0.0
    %472 = vmatprep.subr.mxu0 0.0
    %473 = vmatpush1.msra.mxu0 0.0
    %474 = vmatprep.subr.mxu0 0.0
    %475 = vmatpush1.msra.mxu0 0.0
    %476 = vmatprep.subr.mxu0 0.0
    %477 = vmatpush1.msra.mxu0 0.0
    %478 = vmatprep.subr.mxu0 0.0
    %479 = vmatpush1.msra.mxu0 0.0
    %480 = vmatprep.subr.mxu0 0.0
    %481 = vmatpush1.msra.mxu0 0.0
    %482 = vmatprep.subr.mxu0 0.0
    %483 = vmatpush1.msra.mxu0 0.0
    %484 = vmatprep.subr.mxu0 0.0
    %485 = vmatpush1.msra.mxu0 0.0
    %486 = vmatprep.subr.mxu0 0.0
    %487 = vmatpush1.msra.mxu0 0.0
    %488 = vmatprep.subr.mxu0 0.0
    %489 = vmatpush1.msra.mxu0 0.0
    %490 = vmatprep.subr.mxu0 0.0
    %491 = vmatpush1.msra.mxu0 0.0
    %492 = vmatprep.subr.mxu0 0.0
    %493 = vmatpush1.msra.mxu0 0.0
    %494 = vmatprep.subr.mxu0 0.0
    %495 = vmatpush1.msra.mxu0 0.0
    %496 = vmatprep.subr.mxu0 0.0
    %497 = vmatpush1.msra.mxu0 0.0
    %498 = vmatprep.subr.mxu0 0.0
    %499 = vmatpush1.msra.mxu0 0.0
    %500 = vmatprep.subr.mxu0 0.0
    %501 = vmatpush1.msra.mxu0 0.0
    %502 = vmatprep.subr.mxu0 0.0
    %503 = vmatpush1.msra.mxu0 0.0
    %504 = vmatprep.subr.mxu0 0.0
    %505 = vmatpush1.msra.mxu0 0.0
    %506 = vmatprep.subr.mxu0 0.0
    %507 = vmatpush1.msra.mxu0 0.0
    %508 = vmatprep.subr.mxu0 0.0
    %509 = vmatpush1.msra.mxu0 0.0
    %510 = vmatprep.subr.mxu0 0.0
    %511 = vmatpush1.msra.mxu0 0.0
    %512 = vmatprep.subr.mxu0 0.0
    %513 = vmatpush1.msra.mxu0 0.0
    %514 = vmatprep.subr.mxu0 0.0
    %515 = vmatpush1.msra.mxu0 0.0
    %516 = vmatprep.subr.mxu0 0.0
    %517 = vmatpush1.msra.mxu0 0.0
    %518 = vmatprep.mubr.f32.mxu0 0.0
    %519 = vmatmul.mubr.f32.gmra.mrb[0].mxu0 %v440
    %v520 = vpop.f32.mrb[0].mxu0
    %v521 = vadd.f32 0.0, %v520
    %v522 = vpop.f32.mrb[0].mxu0
    %523 = vmatprep.mubr.f32.mxu0 0.0
    %524 = vmatmul.mubr.f32.gmra.mrb[0].mxu0 %v443
    %v525 = vpop.f32.mrb[0].mxu0
    %v526 = vadd.f32 0.0, %v525
    %v527 = vpop.f32.mrb[0].mxu0
    %528 = vmatprep.mubr.f32.mxu0 0.0
    %529 = vmatmul.mubr.f32.gmra.mrb[0].mxu0 %v446
    %v530 = vpop.f32.mrb[0].mxu0
    %v531 = vadd.f32 0.0, %v530
    %v532 = vpop.f32.mrb[0].mxu0
    %533 = vmatprep.mubr.f32.mxu0 0.0
    %534 = vmatmul.mubr.f32.gmra.mrb[0].mxu0 %v449
    %v535 = vpop.f32.mrb[0].mxu0
    %v536 = vadd.f32 0.0, %v535
    %v537 = vpop.f32.mrb[0].mxu0
    %538 = vdwg.mxu0
    %v539 = vmul.f32 %v21, %v521
    %v540 = vmul.f32 %v22, %v526
    %v541 = vmul.f32 %v23, %v531
    %v542 = vmul.f32 %v24, %v536
    %543 = vst [vmem:[#allocation2] sm:$0xff] %v539
    %544 = vst [vmem:[#allocation2 + $0x8] sm:$0xff] %v540
    %545 = vst [vmem:[#allocation2 + $0x10] sm:$0xff] %v541
    %546 = vst [vmem:[#allocation2 + $0x18] sm:$0xff] %v542
    // Predicated region
    $region22: #{tpu_custom_call.1} parent=1 // pred_check
      _
    $region23: #{tpu_custom_call.1} parent=1 // pred_check_branch
      %548 = sbr.rel (0) target = $region25
    $region24: #{tpu_custom_call.1} parent=1 // pred_region
      %s550 = ssub.s32 512, 512
      %551 = vsyncadd [#allocation3], %s550
      %s552 = sshll.u32 [#allocation2], 4
      %s553 = int_to_ptr.vmem [resolvable:$true] %s552
      %558 = dma.vmem_to_hbm [thread:$0]  %s553, 512, %s5, [#allocation3], 128, 128, 8
    $region25: #{tpu_custom_call.1} parent=1 // pred_fallthru
      _
    // Predicated region
    $region26: #{tpu_custom_call.1} parent=1 // pred_check
      _
    $region27: #{tpu_custom_call.1} parent=1 // pred_check_branch
      %560 = sbr.rel (0) target = $region29
    $region28: #{tpu_custom_call.1} parent=1 // pred_region
      %561 = dma.done [#allocation3], 512
    $region29: #{tpu_custom_call.1} parent=1 // pred_fallthru
      _
    %562 = vsyncpa [#allocation3], 1

</llo_original>
